<compile_context>
chip_gen: v7x
topology: tpu7x:2x2x1
jax: 0.10.0
libtpu: 0.0.40
codegen_flags: <defaults>
</compile_context>

<pallas_src>
import functools
import math

import jax
import jax.numpy as jnp
import numpy as np
from jax.experimental import pallas as pl
from jax.experimental.pallas import tpu as pltpu


# ---------------------------------------------------------------------------
# Kernels
# ---------------------------------------------------------------------------

def _linear4d_2d_kernel(has_bias, compute_dtype, *refs):
    # refs = (x_ref (B,I), w_ref (I, O*N), [b_ref (1, O*N)], o_ref (B, O*N))
    if has_bias:
        x_ref, w_ref, b_ref, o_ref = refs
    else:
        x_ref, w_ref, o_ref = refs
        b_ref = None

    x = x_ref[...]
    w = w_ref[...]
    if compute_dtype is not None:
        x = x.astype(compute_dtype)
        w = w.astype(compute_dtype)

    acc = jnp.dot(x, w, preferred_element_type=jnp.float32)      # (B, O*N) on MXU
    if has_bias:
        acc = acc + b_ref[...]                                    # (1, O*N) broadcast
    o_ref[...] = acc.astype(o_ref.dtype)


def _linear4d_4d_kernel(has_bias, compute_dtype, *refs):
    # refs = (x_ref (N,B,I), w_ref (N,I,O), [b_ref (N,1,O)], o_ref (N,B,O))
    if has_bias:
        x_ref, w_ref, b_ref, o_ref = refs
    else:
        x_ref, w_ref, o_ref = refs
        b_ref = None

    x = x_ref[...]
    w = w_ref[...]
    if compute_dtype is not None:
        x = x.astype(compute_dtype)
        w = w.astype(compute_dtype)

    acc = jnp.einsum('nbi,nio->nbo', x, w,
                     preferred_element_type=jnp.float32)          # batched over n
    if has_bias:
        acc = acc + b_ref[...]                                    # (N,1,O) broadcast
    o_ref[...] = acc.astype(o_ref.dtype)


# ---------------------------------------------------------------------------
# Parameter repacking (would be done once at module init time)
# ---------------------------------------------------------------------------

def _fold_beta(weight, bias, beta):
    """(x @ w + b) * beta == x @ (w * beta) + (b * beta): fold beta into params."""
    if beta is not None:
        weight = weight * beta[:, None, :, :]
        if bias is not None:
            bias = bias * beta
    return weight, bias


# ---------------------------------------------------------------------------
# Forward wrappers
# ---------------------------------------------------------------------------

def _forward_2d(x, weight, bias, beta, compute_dtype):
    """einsum('gion,bi->gbon') path: single (B,I)x(I,O*N) matmul per g."""
    G, I, O, N = weight.shape
    B = x.shape[0]
    ON = O * N

    # Init-time repack in a real module: fold beta, flatten (o,n) -> lane axis.
    weight, bias = _fold_beta(weight, bias, beta)
    w2 = weight.reshape(G, I, ON)                       # 'on' flat -> matches 'gbon'

    inputs = [x, w2]
    in_specs = [
        # Same block for every g: x is fetched/reused, never broadcast in HBM.
        pl.BlockSpec((B, I), lambda g: (0, 0)),
        pl.BlockSpec((None, I, ON), lambda g: (g, 0, 0)),
    ]
    if bias is not None:
        b2 = bias.reshape(G, 1, ON)
        inputs.append(b2)
        in_specs.append(pl.BlockSpec((None, 1, ON), lambda g: (g, 0, 0)))

    kernel = functools.partial(_linear4d_2d_kernel, bias is not None, compute_dtype)

    out = pl.pallas_call(
        kernel,
        out_shape=jax.ShapeDtypeStruct((G, B, ON), x.dtype),
        grid_spec=pltpu.PrefetchScalarGridSpec(
            num_scalar_prefetch=0,
            grid=(G,),
            in_specs=in_specs,
            out_specs=pl.BlockSpec((None, B, ON), lambda g: (g, 0, 0)),
        ),
        compiler_params=pltpu.CompilerParams(
            dimension_semantics=("parallel",)),
    )(*inputs)

    return out.reshape(G, B, O, N)                      # pure reshape, no transpose


def _forward_4d(x, weight, bias, beta, compute_dtype):
    """einsum('gion,gbin->gbon') path: batched-over-n matmul per g."""
    G, I, O, N = weight.shape
    B = x.shape[1]

    # Init-time repack in a real module: fold beta, transpose params once.
    weight, bias = _fold_beta(weight, bias, beta)
    w4 = jnp.transpose(weight, (0, 3, 1, 2))            # (G, N, I, O)

    x_t = jnp.transpose(x, (0, 3, 1, 2))                # (G, N, B, I) per-call glue

    inputs = [x_t, w4]
    in_specs = [
        pl.BlockSpec((None, N, B, I), lambda g: (g, 0, 0, 0)),
        pl.BlockSpec((None, N, I, O), lambda g: (g, 0, 0, 0)),
    ]
    if bias is not None:
        b4 = jnp.transpose(bias, (0, 2, 1))[:, :, None, :]   # (G, N, 1, O)
        inputs.append(b4)
        in_specs.append(pl.BlockSpec((None, N, 1, O), lambda g: (g, 0, 0, 0)))

    kernel = functools.partial(_linear4d_4d_kernel, bias is not None, compute_dtype)

    out_t = pl.pallas_call(
        kernel,
        out_shape=jax.ShapeDtypeStruct((G, N, B, O), x.dtype),
        grid_spec=pltpu.PrefetchScalarGridSpec(
            num_scalar_prefetch=0,
            grid=(G,),
            in_specs=in_specs,
            out_specs=pl.BlockSpec((None, N, B, O), lambda g: (g, 0, 0, 0)),
        ),
        compiler_params=pltpu.CompilerParams(
            dimension_semantics=("parallel",)),
    )(*inputs)

    # TODO(synk): the trailing transpose to 'gbon' is one extra HBM pass; fusing it
    # would need an in-kernel minor-dim lane transpose that is not worth it at small N.
    return jnp.transpose(out_t, (0, 2, 3, 1))           # (G, B, O, N)


def linear4d_forward(x, weight, bias=None, beta=None, *, compute_dtype=None):
    """Pallas equivalent of Linear4D.forward.

    x      : (B, I) or (G, B, I, N)
    weight : (G, I, O, N)
    bias   : (G, O, N) or None
    beta   : (G, O, N) or None
    compute_dtype : optional MXU input dtype (e.g. jnp.bfloat16); accumulation
                    is always f32. None = use input dtype (exact parity).
    returns: (G, B, O, N)
    """
    assert x.ndim >= 2, "Input must be at least 2D"
    if x.ndim == 2:
        return _forward_2d(x, weight, bias, beta, compute_dtype)
    return _forward_4d(x, weight, bias, beta, compute_dtype)


# ---------------------------------------------------------------------------
# Pure-JAX reference (mirrors the PyTorch module)
# ---------------------------------------------------------------------------

def _reference(x, weight, bias=None, beta=None):
    if x.ndim == 2:
        out = jnp.einsum('gion,bi->gbon', weight, x)
    else:
        out = jnp.einsum('gion,gbin->gbon', weight, x)
    if bias is not None:
        out = out + bias[:, None, :, :]
    if beta is not None:
        out = out * beta[:, None, :, :]
    return out


if __name__ == "__main__":
    # Module hyperparameters (small, consistent with Linear4D.__init__).
    G, N, I, O, B = 2, 4, 32, 16, 8

    key = jax.random.PRNGKey(0)
    kw, kb, kx4, kx2 = jax.random.split(key, 4)

    # Deterministic parameter init, mirroring reset_parameters():
    # kaiming_uniform_(a=sqrt(5)) on a 4D weight -> U(-1/sqrt(fan_in), 1/sqrt(fan_in))
    # with fan_in = in_features * out_features * num_nodes (torch fan_in rule).
    fan_in = I * O * N
    bound = 1.0 / math.sqrt(fan_in)
    weight = jax.random.uniform(kw, (G, I, O, N), jnp.float32, -bound, bound)
    bias = jax.random.uniform(kb, (G, O, N), jnp.float32, -bound, bound)
    beta = jnp.ones((G, O, N), jnp.float32)   # nn.init.constant_(beta, 1)

    # 4D input path: einsum('gion,gbin->gbon'), default module config (bias, no beta).
    x4 = jax.random.normal(kx4, (G, B, I, N), jnp.float32)
    out4 = jax.block_until_ready(linear4d_forward(x4, weight, bias=bias))
    ref4 = _reference(x4, weight, bias=bias)
    np.testing.assert_allclose(np.asarray(out4), np.asarray(ref4), rtol=1e-5, atol=1e-5)

    # 2D input path: einsum('gion,bi->gbon'), with bias and beta enabled.
    x2 = jax.random.normal(kx2, (B, I), jnp.float32)
    out2 = jax.block_until_ready(linear4d_forward(x2, weight, bias=bias, beta=beta))
    ref2 = _reference(x2, weight, bias=bias, beta=beta)
    np.testing.assert_allclose(np.asarray(out2), np.asarray(ref2), rtol=1e-5, atol=1e-5)

    # bf16 MXU-input path (v6e/v7x throughput mode), f32 accumulation: looser tolerance.
    out4_bf16 = jax.block_until_ready(
        linear4d_forward(x4, weight, bias=bias, compute_dtype=jnp.bfloat16))
    np.testing.assert_allclose(np.asarray(out4_bf16), np.asarray(ref4),
                               rtol=2e-2, atol=2e-2)

    print("KERNEL_OK")
</pallas_src>

<mosaic_0001>
module attributes {stable_mosaic.version = 11 : i64} {
  func.func @_linear4d_4d_kernel(%arg0: i32, %arg1: memref<1x4x8x32xf32, #tpu.memory_space<vmem>>, %arg2: memref<1x4x32x16xf32, #tpu.memory_space<vmem>>, %arg3: memref<1x4x1x16xf32, #tpu.memory_space<vmem>>, %arg4: memref<1x4x8x16xf32, #tpu.memory_space<vmem>>) attributes {dimension_semantics = [#tpu.dimension_semantics<parallel>], iteration_bounds = array<i64: 2>, scalar_prefetch = 0 : i64, scratch_operands = 0 : i64, tpu.core_type = #tpu.core_type<tc>, window_params = [{transform_indices = @transform_0, window_bounds = array<i64: 1, 4, 8, 32>}, {transform_indices = @transform_1, window_bounds = array<i64: 1, 4, 32, 16>}, {transform_indices = @transform_2, window_bounds = array<i64: 1, 4, 1, 16>}, {transform_indices = @transform_3, window_bounds = array<i64: 1, 4, 8, 16>}]} {
    %c0 = arith.constant 0 : index
    %c0_0 = arith.constant 0 : index
    %c0_1 = arith.constant 0 : index
    %c0_2 = arith.constant 0 : index
    %0 = vector.load %arg1[%c0, %c0_0, %c0_1, %c0_2] : memref<1x4x8x32xf32, #tpu.memory_space<vmem>>, vector<1x4x8x32xf32>
    %1 = vector.shape_cast %0 : vector<1x4x8x32xf32> to vector<4x8x32xf32>
    %c0_3 = arith.constant 0 : index
    %c0_4 = arith.constant 0 : index
    %c0_5 = arith.constant 0 : index
    %c0_6 = arith.constant 0 : index
    %2 = vector.load %arg2[%c0_3, %c0_4, %c0_5, %c0_6] : memref<1x4x32x16xf32, #tpu.memory_space<vmem>>, vector<1x4x32x16xf32>
    %3 = vector.shape_cast %2 : vector<1x4x32x16xf32> to vector<4x32x16xf32>
    "tpu.trace_start"() <{level = 10 : i32, message = "nbi,nio->nbo"}> : () -> ()
    %cst = arith.constant dense<0.000000e+00> : vector<4x8x16xf32>
    %4 = tpu.matmul %1, %3, %cst {dimension_numbers = #tpu.dot_dimension_numbers<[2], [1], [1], [2], [0, 0, 0, 1, 1, 2], [0], [0]>} : vector<4x8x32xf32>, vector<4x32x16xf32>, vector<4x8x16xf32> -> vector<4x8x16xf32>
    "tpu.trace_stop"() : () -> ()
    %c0_7 = arith.constant 0 : index
    %c0_8 = arith.constant 0 : index
    %c0_9 = arith.constant 0 : index
    %c0_10 = arith.constant 0 : index
    %5 = vector.load %arg3[%c0_7, %c0_8, %c0_9, %c0_10] : memref<1x4x1x16xf32, #tpu.memory_space<vmem>>, vector<1x4x1x16xf32>
    %6 = vector.shape_cast %5 : vector<1x4x1x16xf32> to vector<4x1x16xf32>
    %7 = vector.broadcast %6 : vector<4x1x16xf32> to vector<4x8x16xf32>
    %8 = arith.addf %4, %7 : vector<4x8x16xf32>
    %c0_11 = arith.constant 0 : index
    %c0_12 = arith.constant 0 : index
    %c0_13 = arith.constant 0 : index
    %c0_14 = arith.constant 0 : index
    %9 = vector.load %arg4[%c0_11, %c0_12, %c0_13, %c0_14] : memref<1x4x8x16xf32, #tpu.memory_space<vmem>>, vector<1x4x8x16xf32>
    %10 = vector.shape_cast %9 : vector<1x4x8x16xf32> to vector<4x8x16xf32>
    %11 = vector.shape_cast %8 : vector<4x8x16xf32> to vector<1x4x8x16xf32>
    tpu.vector_store %arg4[%c0_11, %c0_12, %c0_13, %c0_14], %11 {strides = array<i32>} : memref<1x4x8x16xf32, #tpu.memory_space<vmem>>, vector<1x4x8x16xf32>,
    return
  }
  func.func @transform_0(%arg0: i32) -> (i32, i32, i32, i32) {
    %c0_i32 = arith.constant 0 : i32
    %c0_i32_0 = arith.constant 0 : i32
    %c0_i32_1 = arith.constant 0 : i32
    %c0_i32_2 = arith.constant 0 : i32
    return %arg0, %c0_i32, %c0_i32_0, %c0_i32_1 : i32, i32, i32, i32
  }
  func.func @transform_1(%arg0: i32) -> (i32, i32, i32, i32) {
    %c0_i32 = arith.constant 0 : i32
    %c0_i32_0 = arith.constant 0 : i32
    %c0_i32_1 = arith.constant 0 : i32
    %c0_i32_2 = arith.constant 0 : i32
    return %arg0, %c0_i32, %c0_i32_0, %c0_i32_1 : i32, i32, i32, i32
  }
  func.func @transform_2(%arg0: i32) -> (i32, i32, i32, i32) {
    %c0_i32 = arith.constant 0 : i32
    %c0_i32_0 = arith.constant 0 : i32
    %c0_i32_1 = arith.constant 0 : i32
    %c0_i32_2 = arith.constant 0 : i32
    return %arg0, %c0_i32, %c0_i32_0, %c0_i32_1 : i32, i32, i32, i32
  }
  func.func @transform_3(%arg0: i32) -> (i32, i32, i32, i32) {
    %c0_i32 = arith.constant 0 : i32
    %c0_i32_0 = arith.constant 0 : i32
    %c0_i32_1 = arith.constant 0 : i32
    %c0_i32_2 = arith.constant 0 : i32
    return %arg0, %c0_i32, %c0_i32_0, %c0_i32_1 : i32, i32, i32, i32
  }
}

</mosaic_0001>

<llo_original>
// kernel: tpu_custom_call.1
$region0: #{tpu_custom_call.1}
  #allocation0 [shape = 'u32[]', space=smem, size = 0x4, offset = 0x4, fixed_abs, tag = 'smem constant byte address 0x4 - core index']
  #allocation1 [shape = 'u32[144,128]{1,0:T(1,128)}', space=vmem, size = 0x12000, scoped, tag = 'internal scratch']
  %s0 = inlined_call_operand.vmem [shape: f32[2,4,8,32], index: 0, kind: input, shape index: {}]
  %s1 = inlined_call_operand.vmem [shape: f32[2,4,32,16], index: 1, kind: input, shape index: {}]
  %s2 = inlined_call_operand.vmem [shape: f32[2,4,1,16], index: 2, kind: input, shape index: {}]
  %s3 = inlined_call_operand.hbm [shape: f32[2,4,8,16], index: 3, kind: output, shape index: {}]
  %s4 = sld [smem:[#allocation0]]
  $region45: #{tpu_custom_call.1} parent=0
    _
  %s6 = ssub.s32 1, %s4
  %s7 = scalar_select 0, %s6, %s4
  $region1: #{tpu_custom_call.1} parent=0
    #allocation2 [shape = 'u8[32768]{0}', space=vmem, size = 0x8000, scoped, tag = 'output window, operand 0']
    #allocation3 [shape = 's32[2]{0}', space=sflag, size = 0x8, scoped, tag = 'scoped memory for tpu_custom_call.1']
    %8 = vsyncpa [#allocation3], 0
    %s9 = scalar_lea.sflag [#allocation3], 1
    %10 = vsyncpa %s9, 0
    loop: start=0, step=1, limit=4
    $region2: #{tpu_custom_call.1} parent=1 // loop_pre_header
      _
    $region3: #{tpu_custom_call.1} parent=1 // loop_header
      %s12 = sphi 0, %s16
      %p13 = scmp.ge.s32.totalorder %s12, 4
      %s22 = sphi 0, %s24
      %s25 = sphi 0, %s22
      %s26 = sphi 0, %s25
      %s42 = sphi 0, %s26
      %s48 = sphi 0, %s50
      %s51 = sphi 0, %s48
      %s52 = sphi 0, %s51
      %s68 = sphi 0, %s52
      %s74 = sphi 0, %s76
      %s77 = sphi 0, %s74
      %s78 = sphi 0, %s77
      %s94 = sphi 0, %s78
      %s100 = sphi 0, %s102
      %s103 = sphi 0, %s100
      %s104 = sphi 0, %s103
      %s120 = sphi 0, %s104
    $region4: #{tpu_custom_call.1} parent=1 // loop_header_branch
      %15 = sbr.rel (%p13) target = $region8
    $region5: #{tpu_custom_call.1} parent=1 // loop_body
      %s17 = ssub.s32 %s12, 1
      %s18 = ssub.s32 %s12, 2
      %s19 = sadd.s32 %s12, 1
      %s20 = ssub.s32 %s12, %s19
      %p21 = scmp.eq.s32.totalorder %s20, 0
      %s23 = sadd.s32 %s22, 1
      %s24 = scalar_select %p21, %s22, %s23
      %p27 = pneg %p21
      %p28 = scmp.eq.s32.totalorder %s12, 1
      %p29 = por %p27, %p28
      %p30 = scmp.ne.s32.totalorder %s22, %s25
      %p31 = scmp.eq.s32.totalorder %s12, 0
      %p32 = por %p30, %p31
      %p33 = scmp.ne.s32.totalorder %s22, %s25
      %p34 = scmp.eq.s32.totalorder %s17, 1
      %p35 = por %p33, %p34
      %p36 = scmp.ne.s32.totalorder %s25, %s26
      %p37 = scmp.eq.s32.totalorder %s17, 0
      %p38 = por %p36, %p37
      %p39 = scmp.ne.s32.totalorder %s25, %s26
      %p40 = scmp.eq.s32.totalorder %s18, 1
      %p41 = por %p39, %p40
      %p43 = scmp.ne.s32.totalorder %s26, %s42
      %p44 = scmp.eq.s32.totalorder %s18, 0
      %p45 = por %p43, %p44
      %s46 = ssub.s32 %s12, %s19
      %p47 = scmp.eq.s32.totalorder %s46, 0
      %s49 = sadd.s32 %s48, 1
      %s50 = scalar_select %p47, %s48, %s49
      %p53 = pneg %p47
      %p54 = scmp.eq.s32.totalorder %s12, 1
      %p55 = por %p53, %p54
      %p56 = scmp.ne.s32.totalorder %s48, %s51
      %p57 = scmp.eq.s32.totalorder %s12, 0
      %p58 = por %p56, %p57
      %p59 = scmp.ne.s32.totalorder %s48, %s51
      %p60 = scmp.eq.s32.totalorder %s17, 1
      %p61 = por %p59, %p60
      %p62 = scmp.ne.s32.totalorder %s51, %s52
      %p63 = scmp.eq.s32.totalorder %s17, 0
      %p64 = por %p62, %p63
      %p65 = scmp.ne.s32.totalorder %s51, %s52
      %p66 = scmp.eq.s32.totalorder %s18, 1
      %p67 = por %p65, %p66
      %p69 = scmp.ne.s32.totalorder %s52, %s68
      %p70 = scmp.eq.s32.totalorder %s18, 0
      %p71 = por %p69, %p70
      %s72 = ssub.s32 %s12, %s19
      %p73 = scmp.eq.s32.totalorder %s72, 0
      %s75 = sadd.s32 %s74, 1
      %s76 = scalar_select %p73, %s74, %s75
      %p79 = pneg %p73
      %p80 = scmp.eq.s32.totalorder %s12, 1
      %p81 = por %p79, %p80
      %p82 = scmp.ne.s32.totalorder %s74, %s77
      %p83 = scmp.eq.s32.totalorder %s12, 0
      %p84 = por %p82, %p83
      %p85 = scmp.ne.s32.totalorder %s74, %s77
      %p86 = scmp.eq.s32.totalorder %s17, 1
      %p87 = por %p85, %p86
      %p88 = scmp.ne.s32.totalorder %s77, %s78
      %p89 = scmp.eq.s32.totalorder %s17, 0
      %p90 = por %p88, %p89
      %p91 = scmp.ne.s32.totalorder %s77, %s78
      %p92 = scmp.eq.s32.totalorder %s18, 1
      %p93 = por %p91, %p92
      %p95 = scmp.ne.s32.totalorder %s78, %s94
      %p96 = scmp.eq.s32.totalorder %s18, 0
      %p97 = por %p95, %p96
      %s98 = ssub.s32 %s12, %s19
      %p99 = scmp.eq.s32.totalorder %s98, 0
      %s101 = sadd.s32 %s100, 1
      %s102 = scalar_select %p99, %s100, %s101
      %p105 = pneg %p99
      %p106 = scmp.eq.s32.totalorder %s12, 1
      %p107 = por %p105, %p106
      %p108 = scmp.ne.s32.totalorder %s100, %s103
      %p109 = scmp.eq.s32.totalorder %s12, 0
      %p110 = por %p108, %p109
      %p111 = scmp.ne.s32.totalorder %s100, %s103
      %p112 = scmp.eq.s32.totalorder %s17, 1
      %p113 = por %p111, %p112
      %p114 = scmp.ne.s32.totalorder %s103, %s104
      %p115 = scmp.eq.s32.totalorder %s17, 0
      %p116 = por %p114, %p115
      %p117 = scmp.ne.s32.totalorder %s103, %s104
      %p118 = scmp.eq.s32.totalorder %s18, 1
      %p119 = por %p117, %p118
      %p121 = scmp.ne.s32.totalorder %s104, %s120
      %p122 = scmp.eq.s32.totalorder %s18, 0
      %p123 = por %p121, %p122
      %p124 = scmp.le.s32.totalorder 1, %s12
      %p125 = scmp.lt.s32.totalorder %s12, 3
      %p126 = pnand %p124, %p125
      %p127 = pneg %p126
      // Predicated region
      $region9: #{tpu_custom_call.1} parent=5 // pred_check
        _
      $region10: #{tpu_custom_call.1} parent=5 // pred_check_branch
        %129 = sbr.rel (%p126) target = $region12
      $region11: #{tpu_custom_call.1} parent=5 // pred_region
        %s130 = ssub.s32 %s12, 1
      $region12: #{tpu_custom_call.1} parent=5 // pred_fallthru
        _
      %p131 = scmp.lt.s32.totalorder %s12, 2
      // Predicated region
      $region13: #{tpu_custom_call.1} parent=5 // pred_check
        %p132 = pneg %p131
      $region14: #{tpu_custom_call.1} parent=5 // pred_check_branch
        %134 = sbr.rel (%p132) target = $region16
      $region15: #{tpu_custom_call.1} parent=5 // pred_region
        // Predicated region
        $region17: #{tpu_custom_call.1} parent=15 // pred_check
          %p135 = pneg %p32
        $region18: #{tpu_custom_call.1} parent=15 // pred_check_branch
          %137 = sbr.rel (%p135) target = $region20
        $region19: #{tpu_custom_call.1} parent=15 // pred_region
          %p138 = scmp.lt.s32.totalorder %s12, 1
          %s139 = scalar_select %p138, %s12, 1
          %s140 = smul.addr %s139, 4
          %s141 = smul.addr %s140, 8
          %s142 = scalar_lea.vmem %s0, %s141
        $region20: #{tpu_custom_call.1} parent=15 // pred_fallthru
          _
        // Predicated region
        $region21: #{tpu_custom_call.1} parent=15 // pred_check
          %p143 = pneg %p58
        $region22: #{tpu_custom_call.1} parent=15 // pred_check_branch
          %145 = sbr.rel (%p143) target = $region24
        $region23: #{tpu_custom_call.1} parent=15 // pred_region
          %p146 = scmp.lt.s32.totalorder %s12, 1
          %s147 = scalar_select %p146, %s12, 1
          %s148 = smul.addr %s147, 16
          %s149 = smul.addr %s148, 8
          %s150 = scalar_lea.vmem %s1, %s149
        $region24: #{tpu_custom_call.1} parent=15 // pred_fallthru
          _
        // Predicated region
        $region25: #{tpu_custom_call.1} parent=15 // pred_check
          %p151 = pneg %p84
        $region26: #{tpu_custom_call.1} parent=15 // pred_check_branch
          %153 = sbr.rel (%p151) target = $region28
        $region27: #{tpu_custom_call.1} parent=15 // pred_region
          %p154 = scmp.lt.s32.totalorder %s12, 1
          %s155 = scalar_select %p154, %s12, 1
          %s156 = smul.addr %s155, 4
          %s157 = scalar_lea.vmem %s2, %s156
        $region28: #{tpu_custom_call.1} parent=15 // pred_fallthru
          _
      $region16: #{tpu_custom_call.1} parent=5 // pred_fallthru
        _
      %p158 = scmp.le.s32.totalorder 1, %s12
      %p159 = scmp.lt.s32.totalorder %s12, 3
      %p160 = pnand %p158, %p159
      %p161 = pneg %p160
      // Predicated region
      $region29: #{tpu_custom_call.1} parent=5 // pred_check
        _
      $region30: #{tpu_custom_call.1} parent=5 // pred_check_branch
        %163 = sbr.rel (%p160) target = $region32
      $region31: #{tpu_custom_call.1} parent=5 // pred_region
        %s164 = ssub.s32 %s12, 1
        %p165 = scmp.lt.s32.totalorder %s17, 1
        %s166 = scalar_select %p165, %s17, 1
        %s167 = smul.addr %s166, 4
        %s168 = smul.addr %s167, 8
        %s169 = scalar_lea.vmem %s0, %s168
        %p170 = pneg %p38
        %p171 = pneg %p35
        %p172 = scmp.lt.s32.totalorder %s17, 1
        %s173 = scalar_select %p172, %s17, 1
        %s174 = smul.addr %s173, 16
        %s175 = smul.addr %s174, 8
        %s176 = scalar_lea.vmem %s1, %s175
        %p177 = pneg %p64
        %p178 = pneg %p61
        %p179 = scmp.lt.s32.totalorder %s17, 1
        %s180 = scalar_select %p179, %s17, 1
        %s181 = smul.addr %s180, 4
        %s182 = scalar_lea.vmem %s2, %s181
        %p183 = pneg %p90
        %p184 = pneg %p87
        %p185 = pneg %p116
        %p186 = pneg %p113
        %s187 = sand.u32 %s103, 1
        %s188 = scalar_lea.sflag [#allocation3], %s187
        %s189 = sand.u32 %s103, 1
        %s190 = smul.addr %s189, 32
        %s191 = scalar_lea.vmem [#allocation2], %s190
        %p192 = scmp.lt.s32.totalorder %s17, 1
        %s193 = scalar_select %p192, %s17, 1
        %s194 = smul.addr %s193, 4
        %s195 = smul.addr %s194, 8
        %s196 = scalar_lea.vmem %s0, %s195
        %p197 = scmp.lt.s32.totalorder %s17, 1
        %s198 = scalar_select %p197, %s17, 1
        %s199 = smul.addr %s198, 16
        %s200 = smul.addr %s199, 8
        %s201 = scalar_lea.vmem %s1, %s200
        %p202 = scmp.lt.s32.totalorder %s17, 1
        %s203 = scalar_select %p202, %s17, 1
        %s204 = smul.addr %s203, 4
        %s205 = scalar_lea.vmem %s2, %s204
        %v206 = vld [vmem:[%s196] sm:$0xff]
        %v207 = vld [vmem:[%s196 + $0x8] sm:$0xff]
        %v208 = vld [vmem:[%s196 + $0x10] sm:$0xff]
        %v209 = vld [vmem:[%s196 + $0x18] sm:$0xff]
        %v210 = vld [vmem:[%s201] sm:$0xff]
        %v211 = vld [vmem:[%s201 + $0x8] sm:$0xff]
        %v212 = vld [vmem:[%s201 + $0x10] sm:$0xff]
        %v213 = vld [vmem:[%s201 + $0x18] sm:$0xff]
        %v214 = vld [vmem:[%s201 + $0x20] sm:$0xff]
        %v215 = vld [vmem:[%s201 + $0x28] sm:$0xff]
        %v216 = vld [vmem:[%s201 + $0x30] sm:$0xff]
        %v217 = vld [vmem:[%s201 + $0x38] sm:$0xff]
        %v218 = vld [vmem:[%s201 + $0x40] sm:$0xff]
        %v219 = vld [vmem:[%s201 + $0x48] sm:$0xff]
        %v220 = vld [vmem:[%s201 + $0x50] sm:$0xff]
        %v221 = vld [vmem:[%s201 + $0x58] sm:$0xff]
        %v222 = vld [vmem:[%s201 + $0x60] sm:$0xff]
        %v223 = vld [vmem:[%s201 + $0x68] sm:$0xff]
        %v224 = vld [vmem:[%s201 + $0x70] sm:$0xff]
        %v225 = vld [vmem:[%s201 + $0x78] sm:$0xff]
        %v226 = vld [vmem:[%s205] sm:$0x1]
        %v227 = vld [vmem:[%s205 + $0x1] sm:$0x1]
        %v228 = vld [vmem:[%s205 + $0x2] sm:$0x1]
        %v229 = vld [vmem:[%s205 + $0x3] sm:$0x1]
        %v234 = vlaneseq
        %v235 = vshrl.u32 %v234, 7
        %v236 = vsub.s32 0, %v235
        %v237 = vrot.slane %v226, %v236
        %v238 = vlaneseq
        %v239 = vshrl.u32 %v238, 7
        %v240 = vsub.s32 0, %v239
        %v241 = vrot.slane %v227, %v240
        %v242 = vlaneseq
        %v243 = vshrl.u32 %v242, 7
        %v244 = vsub.s32 0, %v243
        %v245 = vrot.slane %v228, %v244
        %v246 = vlaneseq
        %v247 = vshrl.u32 %v246, 7
        %v248 = vsub.s32 0, %v247
        %v249 = vrot.slane %v229, %v248
        %vm254 = vcmask 261120
        %v256 = vsel %vm254, %v206, 0
        %258 = vmatprep.subr.mxu0 0.0
        %259 = vmatpush1.msra.mxu0 %v210
        %260 = vmatprep.subr.mxu0 0.0
        %261 = vmatpush1.msra.mxu0 %v211
        %262 = vmatprep.subr.mxu0 0.0
        %263 = vmatpush1.msra.mxu0 %v212
        %264 = vmatprep.subr.mxu0 0.0
        %265 = vmatpush1.msra.mxu0 %v213
        %266 = vmatprep.subr.mxu0 0.0
        %267 = vmatpush1.msra.mxu0 0.0
        %268 = vmatprep.subr.mxu0 0.0
        %269 = vmatpush1.msra.mxu0 0.0
        %270 = vmatprep.subr.mxu0 0.0
        %271 = vmatpush1.msra.mxu0 0.0
        %272 = vmatprep.subr.mxu0 0.0
        %273 = vmatpush1.msra.mxu0 0.0
        %274 = vmatprep.subr.mxu0 0.0
        %275 = vmatpush1.msra.mxu0 0.0
        %276 = vmatprep.subr.mxu0 0.0
        %277 = vmatpush1.msra.mxu0 0.0
        %278 = vmatprep.subr.mxu0 0.0
        %279 = vmatpush1.msra.mxu0 0.0
        %280 = vmatprep.subr.mxu0 0.0
        %281 = vmatpush1.msra.mxu0 0.0
        %282 = vmatprep.subr.mxu0 0.0
        %283 = vmatpush1.msra.mxu0 0.0
        %284 = vmatprep.subr.mxu0 0.0
        %285 = vmatpush1.msra.mxu0 0.0
        %286 = vmatprep.subr.mxu0 0.0
        %287 = vmatpush1.msra.mxu0 0.0
        %288 = vmatprep.subr.mxu0 0.0
        %289 = vmatpush1.msra.mxu0 0.0
        %290 = vmatprep.subr.mxu0 0.0
        %291 = vmatpush1.msra.mxu0 0.0
        %292 = vmatprep.subr.mxu0 0.0
        %293 = vmatpush1.msra.mxu0 0.0
        %294 = vmatprep.subr.mxu0 0.0
        %295 = vmatpush1.msra.mxu0 0.0
        %296 = vmatprep.subr.mxu0 0.0
        %297 = vmatpush1.msra.mxu0 0.0
        %298 = vmatprep.subr.mxu0 0.0
        %299 = vmatpush1.msra.mxu0 0.0
        %300 = vmatprep.subr.mxu0 0.0
        %301 = vmatpush1.msra.mxu0 0.0
        %302 = vmatprep.subr.mxu0 0.0
        %303 = vmatpush1.msra.mxu0 0.0
        %304 = vmatprep.subr.mxu0 0.0
        %305 = vmatpush1.msra.mxu0 0.0
        %306 = vmatprep.subr.mxu0 0.0
        %307 = vmatpush1.msra.mxu0 0.0
        %308 = vmatprep.subr.mxu0 0.0
        %309 = vmatpush1.msra.mxu0 0.0
        %310 = vmatprep.subr.mxu0 0.0
        %311 = vmatpush1.msra.mxu0 0.0
        %312 = vmatprep.subr.mxu0 0.0
        %313 = vmatpush1.msra.mxu0 0.0
        %314 = vmatprep.subr.mxu0 0.0
        %315 = vmatpush1.msra.mxu0 0.0
        %316 = vmatprep.subr.mxu0 0.0
        %317 = vmatpush1.msra.mxu0 0.0
        %318 = vmatprep.subr.mxu0 0.0
        %319 = vmatpush1.msra.mxu0 0.0
        %320 = vmatprep.subr.mxu0 0.0
        %321 = vmatpush1.msra.mxu0 0.0
        %322 = vmatprep.mubr.f32.mxu0 0.0
        %323 = vmatmul.mubr.f32.gmra.mrb[0].mxu0 %v256
        %v324 = vpop.f32.mrb[0].mxu0
        %v325 = vadd.f32 %v237, %v324
        %v326 = vpop.f32.mrb[0].mxu0
        %327 = vdwg.mxu0
        %v329 = vsel %vm254, %v207, 0
        %331 = vmatprep.subr.mxu0 0.0
        %332 = vmatpush1.msra.mxu0 %v214
        %333 = vmatprep.subr.mxu0 0.0
        %334 = vmatpush1.msra.mxu0 %v215
        %335 = vmatprep.subr.mxu0 0.0
        %336 = vmatpush1.msra.mxu0 %v216
        %337 = vmatprep.subr.mxu0 0.0
        %338 = vmatpush1.msra.mxu0 %v217
        %339 = vmatprep.subr.mxu0 0.0
        %340 = vmatpush1.msra.mxu0 0.0
        %341 = vmatprep.subr.mxu0 0.0
        %342 = vmatpush1.msra.mxu0 0.0
        %343 = vmatprep.subr.mxu0 0.0
        %344 = vmatpush1.msra.mxu0 0.0
        %345 = vmatprep.subr.mxu0 0.0
        %346 = vmatpush1.msra.mxu0 0.0
        %347 = vmatprep.subr.mxu0 0.0
        %348 = vmatpush1.msra.mxu0 0.0
        %349 = vmatprep.subr.mxu0 0.0
        %350 = vmatpush1.msra.mxu0 0.0
        %351 = vmatprep.subr.mxu0 0.0
        %352 = vmatpush1.msra.mxu0 0.0
        %353 = vmatprep.subr.mxu0 0.0
        %354 = vmatpush1.msra.mxu0 0.0
        %355 = vmatprep.subr.mxu0 0.0
        %356 = vmatpush1.msra.mxu0 0.0
        %357 = vmatprep.subr.mxu0 0.0
        %358 = vmatpush1.msra.mxu0 0.0
        %359 = vmatprep.subr.mxu0 0.0
        %360 = vmatpush1.msra.mxu0 0.0
        %361 = vmatprep.subr.mxu0 0.0
        %362 = vmatpush1.msra.mxu0 0.0
        %363 = vmatprep.subr.mxu0 0.0
        %364 = vmatpush1.msra.mxu0 0.0
        %365 = vmatprep.subr.mxu0 0.0
        %366 = vmatpush1.msra.mxu0 0.0
        %367 = vmatprep.subr.mxu0 0.0
        %368 = vmatpush1.msra.mxu0 0.0
        %369 = vmatprep.subr.mxu0 0.0
        %370 = vmatpush1.msra.mxu0 0.0
        %371 = vmatprep.subr.mxu0 0.0
        %372 = vmatpush1.msra.mxu0 0.0
        %373 = vmatprep.subr.mxu0 0.0
        %374 = vmatpush1.msra.mxu0 0.0
        %375 = vmatprep.subr.mxu0 0.0
        %376 = vmatpush1.msra.mxu0 0.0
        %377 = vmatprep.subr.mxu0 0.0
        %378 = vmatpush1.msra.mxu0 0.0
        %379 = vmatprep.subr.mxu0 0.0
        %380 = vmatpush1.msra.mxu0 0.0
        %381 = vmatprep.subr.mxu0 0.0
        %382 = vmatpush1.msra.mxu0 0.0
        %383 = vmatprep.subr.mxu0 0.0
        %384 = vmatpush1.msra.mxu0 0.0
        %385 = vmatprep.subr.mxu0 0.0
        %386 = vmatpush1.msra.mxu0 0.0
        %387 = vmatprep.subr.mxu0 0.0
        %388 = vmatpush1.msra.mxu0 0.0
        %389 = vmatprep.subr.mxu0 0.0
        %390 = vmatpush1.msra.mxu0 0.0
        %391 = vmatprep.subr.mxu0 0.0
        %392 = vmatpush1.msra.mxu0 0.0
        %393 = vmatprep.subr.mxu0 0.0
        %394 = vmatpush1.msra.mxu0 0.0
        %395 = vmatprep.mubr.f32.mxu0 0.0
        %396 = vmatmul.mubr.f32.gmra.mrb[0].mxu0 %v329
        %v397 = vpop.f32.mrb[0].mxu0
        %v398 = vadd.f32 %v241, %v397
        %v399 = vpop.f32.mrb[0].mxu0
        %400 = vdwg.mxu0
        %v402 = vsel %vm254, %v208, 0
        %404 = vmatprep.subr.mxu0 0.0
        %405 = vmatpush1.msra.mxu0 %v218
        %406 = vmatprep.subr.mxu0 0.0
        %407 = vmatpush1.msra.mxu0 %v219
        %408 = vmatprep.subr.mxu0 0.0
        %409 = vmatpush1.msra.mxu0 %v220
        %410 = vmatprep.subr.mxu0 0.0
        %411 = vmatpush1.msra.mxu0 %v221
        %412 = vmatprep.subr.mxu0 0.0
        %413 = vmatpush1.msra.mxu0 0.0
        %414 = vmatprep.subr.mxu0 0.0
        %415 = vmatpush1.msra.mxu0 0.0
        %416 = vmatprep.subr.mxu0 0.0
        %417 = vmatpush1.msra.mxu0 0.0
        %418 = vmatprep.subr.mxu0 0.0
        %419 = vmatpush1.msra.mxu0 0.0
        %420 = vmatprep.subr.mxu0 0.0
        %421 = vmatpush1.msra.mxu0 0.0
        %422 = vmatprep.subr.mxu0 0.0
        %423 = vmatpush1.msra.mxu0 0.0
        %424 = vmatprep.subr.mxu0 0.0
        %425 = vmatpush1.msra.mxu0 0.0
        %426 = vmatprep.subr.mxu0 0.0
        %427 = vmatpush1.msra.mxu0 0.0
        %428 = vmatprep.subr.mxu0 0.0
        %429 = vmatpush1.msra.mxu0 0.0
        %430 = vmatprep.subr.mxu0 0.0
        %431 = vmatpush1.msra.mxu0 0.0
        %432 = vmatprep.subr.mxu0 0.0
        %433 = vmatpush1.msra.mxu0 0.0
        %434 = vmatprep.subr.mxu0 0.0
        %435 = vmatpush1.msra.mxu0 0.0
        %436 = vmatprep.subr.mxu0 0.0
        %437 = vmatpush1.msra.mxu0 0.0
        %438 = vmatprep.subr.mxu0 0.0
        %439 = vmatpush1.msra.mxu0 0.0
        %440 = vmatprep.subr.mxu0 0.0
        %441 = vmatpush1.msra.mxu0 0.0
        %442 = vmatprep.subr.mxu0 0.0
        %443 = vmatpush1.msra.mxu0 0.0
        %444 = vmatprep.subr.mxu0 0.0
        %445 = vmatpush1.msra.mxu0 0.0
        %446 = vmatprep.subr.mxu0 0.0
        %447 = vmatpush1.msra.mxu0 0.0
        %448 = vmatprep.subr.mxu0 0.0
        %449 = vmatpush1.msra.mxu0 0.0
        %450 = vmatprep.subr.mxu0 0.0
        %451 = vmatpush1.msra.mxu0 0.0
        %452 = vmatprep.subr.mxu0 0.0
        %453 = vmatpush1.msra.mxu0 0.0
        %454 = vmatprep.subr.mxu0 0.0
        %455 = vmatpush1.msra.mxu0 0.0
        %456 = vmatprep.subr.mxu0 0.0
        %457 = vmatpush1.msra.mxu0 0.0
        %458 = vmatprep.subr.mxu0 0.0
        %459 = vmatpush1.msra.mxu0 0.0
        %460 = vmatprep.subr.mxu0 0.0
        %461 = vmatpush1.msra.mxu0 0.0
        %462 = vmatprep.subr.mxu0 0.0
        %463 = vmatpush1.msra.mxu0 0.0
        %464 = vmatprep.subr.mxu0 0.0
        %465 = vmatpush1.msra.mxu0 0.0
        %466 = vmatprep.subr.mxu0 0.0
        %467 = vmatpush1.msra.mxu0 0.0
        %468 = vmatprep.mubr.f32.mxu0 0.0
        %469 = vmatmul.mubr.f32.gmra.mrb[0].mxu0 %v402
        %v470 = vpop.f32.mrb[0].mxu0
        %v471 = vadd.f32 %v245, %v470
        %v472 = vpop.f32.mrb[0].mxu0
        %473 = vdwg.mxu0
        %v475 = vsel %vm254, %v209, 0
        %477 = vmatprep.subr.mxu0 0.0
        %478 = vmatpush1.msra.mxu0 %v222
        %479 = vmatprep.subr.mxu0 0.0
        %480 = vmatpush1.msra.mxu0 %v223
        %481 = vmatprep.subr.mxu0 0.0
        %482 = vmatpush1.msra.mxu0 %v224
        %483 = vmatprep.subr.mxu0 0.0
        %484 = vmatpush1.msra.mxu0 %v225
        %485 = vmatprep.subr.mxu0 0.0
        %486 = vmatpush1.msra.mxu0 0.0
        %487 = vmatprep.subr.mxu0 0.0
        %488 = vmatpush1.msra.mxu0 0.0
        %489 = vmatprep.subr.mxu0 0.0
        %490 = vmatpush1.msra.mxu0 0.0
        %491 = vmatprep.subr.mxu0 0.0
        %492 = vmatpush1.msra.mxu0 0.0
        %493 = vmatprep.subr.mxu0 0.0
        %494 = vmatpush1.msra.mxu0 0.0
        %495 = vmatprep.subr.mxu0 0.0
        %496 = vmatpush1.msra.mxu0 0.0
        %497 = vmatprep.subr.mxu0 0.0
        %498 = vmatpush1.msra.mxu0 0.0
        %499 = vmatprep.subr.mxu0 0.0
        %500 = vmatpush1.msra.mxu0 0.0
        %501 = vmatprep.subr.mxu0 0.0
        %502 = vmatpush1.msra.mxu0 0.0
        %503 = vmatprep.subr.mxu0 0.0
        %504 = vmatpush1.msra.mxu0 0.0
        %505 = vmatprep.subr.mxu0 0.0
        %506 = vmatpush1.msra.mxu0 0.0
        %507 = vmatprep.subr.mxu0 0.0
        %508 = vmatpush1.msra.mxu0 0.0
        %509 = vmatprep.subr.mxu0 0.0
        %510 = vmatpush1.msra.mxu0 0.0
        %511 = vmatprep.subr.mxu0 0.0
        %512 = vmatpush1.msra.mxu0 0.0
        %513 = vmatprep.subr.mxu0 0.0
        %514 = vmatpush1.msra.mxu0 0.0
        %515 = vmatprep.subr.mxu0 0.0
        %516 = vmatpush1.msra.mxu0 0.0
        %517 = vmatprep.subr.mxu0 0.0
        %518 = vmatpush1.msra.mxu0 0.0
        %519 = vmatprep.subr.mxu0 0.0
        %520 = vmatpush1.msra.mxu0 0.0
        %521 = vmatprep.subr.mxu0 0.0
        %522 = vmatpush1.msra.mxu0 0.0
        %523 = vmatprep.subr.mxu0 0.0
        %524 = vmatpush1.msra.mxu0 0.0
        %525 = vmatprep.subr.mxu0 0.0
        %526 = vmatpush1.msra.mxu0 0.0
        %527 = vmatprep.subr.mxu0 0.0
        %528 = vmatpush1.msra.mxu0 0.0
        %529 = vmatprep.subr.mxu0 0.0
        %530 = vmatpush1.msra.mxu0 0.0
        %531 = vmatprep.subr.mxu0 0.0
        %532 = vmatpush1.msra.mxu0 0.0
        %533 = vmatprep.subr.mxu0 0.0
        %534 = vmatpush1.msra.mxu0 0.0
        %535 = vmatprep.subr.mxu0 0.0
        %536 = vmatpush1.msra.mxu0 0.0
        %537 = vmatprep.subr.mxu0 0.0
        %538 = vmatpush1.msra.mxu0 0.0
        %539 = vmatprep.subr.mxu0 0.0
        %540 = vmatpush1.msra.mxu0 0.0
        %541 = vmatprep.mubr.f32.mxu0 0.0
        %542 = vmatmul.mubr.f32.gmra.mrb[0].mxu0 %v475
        %v543 = vpop.f32.mrb[0].mxu0
        %v544 = vadd.f32 %v249, %v543
        %v545 = vpop.f32.mrb[0].mxu0
        %546 = vdwg.mxu0
        %vm547 = vcmask 130048
        %548 = vst.msk [vmem:[%s191] sm:$0xff] %vm547, %v325
        %549 = vst.msk [vmem:[%s191 + $0x8] sm:$0xff] %vm547, %v398
        %550 = vst.msk [vmem:[%s191 + $0x10] sm:$0xff] %vm547, %v471
        %551 = vst.msk [vmem:[%s191 + $0x18] sm:$0xff] %vm547, %v544
        %s552 = sand.u32 %s103, 1
        %s553 = scalar_lea.sflag [#allocation3], %s552
        %s554 = sand.u32 %s103, 1
        %s555 = smul.addr %s554, 32
        %s556 = scalar_lea.vmem [#allocation2], %s555
        // Predicated region
        $region33: #{tpu_custom_call.1} parent=31 // pred_check
          %p557 = pneg %p113
        $region34: #{tpu_custom_call.1} parent=31 // pred_check_branch
          %559 = sbr.rel (%p557) target = $region36
        $region35: #{tpu_custom_call.1} parent=31 // pred_region
          %s561 = ssub.s32 512, 512
          %562 = vsyncadd %s553, %s561
          %s563 = smul.addr %s17, 4
          %s564 = smul.addr %s563, 128
          %s565 = scalar_lea.hbm %s3, %s564
          %s566 = sshll.u32 %s556, 4
          %s567 = int_to_ptr.vmem [resolvable:$true] %s566
          %572 = dma.vmem_to_hbm [thread:$0]  %s567, 512, %s565, %s553, 128, 128, 8
        $region36: #{tpu_custom_call.1} parent=31 // pred_fallthru
          _
      $region32: #{tpu_custom_call.1} parent=5 // pred_fallthru
        _
      %p573 = scmp.le.s32.totalorder 2, %s12
      // Predicated region
      $region37: #{tpu_custom_call.1} parent=5 // pred_check
        %p574 = pneg %p573
      $region38: #{tpu_custom_call.1} parent=5 // pred_check_branch
        %576 = sbr.rel (%p574) target = $region40
      $region39: #{tpu_custom_call.1} parent=5 // pred_region
        %s577 = ssub.s32 %s12, 2
        // Predicated region
        $region41: #{tpu_custom_call.1} parent=39 // pred_check
          %p578 = pneg %p119
        $region42: #{tpu_custom_call.1} parent=39 // pred_check_branch
          %580 = sbr.rel (%p578) target = $region44
        $region43: #{tpu_custom_call.1} parent=39 // pred_region
          %s581 = sand.u32 %s104, 1
          %s582 = scalar_lea.sflag [#allocation3], %s581
          %s583 = sand.u32 %s104, 1
          %s584 = smul.addr %s583, 32
          %s585 = scalar_lea.vmem [#allocation2], %s584
          %586 = dma.done %s582, 512
        $region44: #{tpu_custom_call.1} parent=39 // pred_fallthru
          _
      $region40: #{tpu_custom_call.1} parent=5 // pred_fallthru
        _
    $region6: #{tpu_custom_call.1} parent=1 // loop_footer
      %s16 = sadd.s32 1, %s12
    $region7: #{tpu_custom_call.1} parent=1 // loop_footer_branch
      %11 = sbr.rel target = $region3
    $region8: #{tpu_custom_call.1} parent=1 // loop_exit
      _
    %587 = vsyncpa [#allocation3], 1
    %s588 = scalar_lea.sflag [#allocation3], 1
    %589 = vsyncpa %s588, 1

</llo_original>
